<compile_context>
chip_gen: v5e
topology: v5e:2x2
jax: 0.10.0
libtpu: 0.0.40
codegen_flags: <defaults>
</compile_context>

<pallas_src>
import functools

import jax
import jax.numpy as jnp
from jax.experimental import pallas as pl
from jax.experimental.pallas import tpu as pltpu


def _round_up(x: int, m: int) -> int:
    return (x + m - 1) // m * m


def _device_defaults():
    """Generation-specific tile / VMEM defaults."""
    kind = ""
    try:
        kind = jax.devices()[0].device_kind.lower()
    except Exception:  # pragma: no cover - defensive
        pass
    if "v7" in kind or "7x" in kind:
        # 64 MiB physical VMEM per TC, 2 TCs/chip -> smaller tiles, headroom,
        # and keep >=2 row tiles so both cores get work.
        return dict(tm=512, th=256, e_align=256, vmem=48 * 1024 * 1024,
                    split_rows=True)
    if "v6" in kind:
        return dict(tm=512, th=512, e_align=256, vmem=100 * 1024 * 1024,
                    split_rows=False)
    if "v5" in kind:
        # v5e ridge ~240 flop/byte: TM=256 is already near compute-bound.
        return dict(tm=256, th=512, e_align=128, vmem=100 * 1024 * 1024,
                    split_rows=False)
    # Unknown device: conservative.
    return dict(tm=256, th=256, e_align=128, vmem=48 * 1024 * 1024,
                split_rows=False)


def _apply_activation(name: str, x):
    # Activation is applied on the f32 matmul output (v5e has no bf16 VPU/EUP).
    if name == "relu":
        return jnp.maximum(x, 0.0)
    if name == "silu":
        return x * jax.nn.sigmoid(x)
    if name == "sigmoid":
        return jax.nn.sigmoid(x)
    if name == "gelu":
        # TODO(synk): torch F.gelu defaults to exact erf; tanh approximation used here (EUP path).
        return jax.nn.gelu(x, approximate=True)
    raise ValueError(f"unsupported activation: {name}")


def _ffn_kernel(x_ref, w1_ref, b1_ref, w2_ref, b2_ref, o_ref, acc_ref, *, activation):
    j = pl.program_id(1)

    @pl.when(j == 0)
    def _():
        acc_ref[...] = jnp.zeros_like(acc_ref)

    h = jnp.dot(x_ref[...], w1_ref[...], preferred_element_type=jnp.float32)
    h = _apply_activation(activation, h + b1_ref[...])
    acc_ref[...] += jnp.dot(h.astype(w2_ref.dtype), w2_ref[...],
                            preferred_element_type=jnp.float32)

    @pl.when(j == pl.num_programs(1) - 1)
    def _():
        o_ref[...] = (acc_ref[...] + b2_ref[...]).astype(o_ref.dtype)


def _ffn_kernel_gated(x_ref, wf_ref, bf_ref, w2_ref, b2_ref, o_ref, acc_ref, *,
                      activation, th):
    j = pl.program_id(1)

    @pl.when(j == 0)
    def _():
        acc_ref[...] = jnp.zeros_like(acc_ref)

    # One wide matmul covers both the gate and the up projection for this
    # TH chunk (columns [0:th) = gate, [th:2*th) = up).
    hw = jnp.dot(x_ref[...], wf_ref[...],
                 preferred_element_type=jnp.float32) + bf_ref[...]
    g = _apply_activation(activation, hw[:, :th])
    h = hw[:, th:]
    acc_ref[...] += jnp.dot((g * h).astype(w2_ref.dtype), w2_ref[...],
                            preferred_element_type=jnp.float32)

    @pl.when(j == pl.num_programs(1) - 1)
    def _():
        o_ref[...] = (acc_ref[...] + b2_ref[...]).astype(o_ref.dtype)


def _pad2d(a, rows, cols):
    pr, pc = rows - a.shape[0], cols - a.shape[1]
    if pr or pc:
        a = jnp.pad(a, ((0, pr), (0, pc)))
    return a


def prepare_ffn_params(params, *, gated: bool, th: int | None = None,
                       e_align: int | None = None, param_dtype=None):
    """One-time weight prep (hoisted out of the forward hot path).

    Pads weights/biases to hardware-friendly sizes, optionally casts to a
    compact dtype (e.g. bf16), and for the gated variant interleaves the
    gate/up projections per TH chunk into a single wide weight so the kernel
    issues one MXU matmul + one weight DMA stream per grid step.

    NOTE: zero padding is load-bearing for correctness -- padded hidden
    columns pass through the activation (e.g. sigmoid(0)=0.5) but are
    cancelled by the zero-padded W2 rows; padded E columns are cancelled by
    zero W1/Wg rows and zero biases. Do not pass pre-padded non-zero weights.
    """
    dev = _device_defaults()
    th = dev["th"] if th is None else th
    e_align = dev["e_align"] if e_align is None else e_align

    E, H = params["w1"].shape
    E_pad = _round_up(E, e_align)
    TH = min(th, _round_up(H, e_align))
    H_pad = _round_up(H, TH)
    n_h = H_pad // TH

    def cast(a):
        return a if param_dtype is None else a.astype(param_dtype)

    w1 = _pad2d(cast(params["w1"]), E_pad, H_pad)
    b1 = _pad2d(cast(params["b1"]), 1, H_pad)
    w2 = _pad2d(cast(params["w2"]), H_pad, E_pad)
    b2 = _pad2d(cast(params["b2"]), 1, E_pad)

    if gated:
        wg = _pad2d(cast(params["wg"]), E_pad, H_pad)
        bg = _pad2d(cast(params["bg"]), 1, H_pad)
        w_up = jnp.stack([wg.reshape(E_pad, n_h, TH), w1.reshape(E_pad, n_h, TH)],
                         axis=2).reshape(E_pad, 2 * H_pad)
        b_up = jnp.stack([bg.reshape(1, n_h, TH), b1.reshape(1, n_h, TH)],
                         axis=2).reshape(1, 2 * H_pad)
    else:
        w_up, b_up = w1, b1

    return {
        "gated": gated, "E": E, "H": H,
        "E_pad": E_pad, "H_pad": H_pad, "TH": TH,
        "w_up": jax.device_put(w_up), "b_up": jax.device_put(b_up),
        "w2": jax.device_put(w2), "b2": jax.device_put(b2),
    }


def feedforward_pallas(x, prepared, *, activation: str,
                       tm: int | None = None,
                       vmem_limit_bytes: int | None = None):
    """x: (batch, seq, embed_dim). `prepared` from prepare_ffn_params()."""
    dev = _device_defaults()
    tm = dev["tm"] if tm is None else tm
    vmem_limit_bytes = dev["vmem"] if vmem_limit_bytes is None else vmem_limit_bytes

    B, S, E = x.shape
    assert E == prepared["E"], "embed_dim mismatch with prepared params"
    gated = prepared["gated"]
    E_pad, H_pad, TH = prepared["E_pad"], prepared["H_pad"], prepared["TH"]
    N = B * S

    # Row tiling: multiple of 16 (bf16 sublane packing). On v7x keep at least
    # two row tiles when possible so both TensorCores get work.
    TM = min(tm, _round_up(N, 16))
    if dev["split_rows"] and N > 16 and TM >= N:
        TM = _round_up((N + 1) // 2, 16)
    N_pad = _round_up(N, TM)
    n_row = N_pad // TM
    n_h = H_pad // TH

    w_dtype = prepared["w_up"].dtype
    x2d = x.reshape(N, E)
    if x2d.dtype != w_dtype:
        x2d = x2d.astype(w_dtype)   # keep both MXU operands in the fast dtype
    x2d = _pad2d(x2d, N_pad, E_pad)

    x_spec = pl.BlockSpec((TM, E_pad), lambda i, j: (i, 0))
    w2_spec = pl.BlockSpec((TH, E_pad), lambda i, j: (j, 0))
    b2_spec = pl.BlockSpec((1, E_pad), lambda i, j: (0, 0))
    out_spec = pl.BlockSpec((TM, E_pad), lambda i, j: (i, 0))

    if gated:
        kernel = functools.partial(_ffn_kernel_gated, activation=activation, th=TH)
        in_specs = [x_spec,
                    pl.BlockSpec((E_pad, 2 * TH), lambda i, j: (0, j)),
                    pl.BlockSpec((1, 2 * TH), lambda i, j: (0, j)),
                    w2_spec, b2_spec]
    else:
        kernel = functools.partial(_ffn_kernel, activation=activation)
        in_specs = [x_spec,
                    pl.BlockSpec((E_pad, TH), lambda i, j: (0, j)),
                    pl.BlockSpec((1, TH), lambda i, j: (0, j)),
                    w2_spec, b2_spec]

    out = pl.pallas_call(
        kernel,
        out_shape=jax.ShapeDtypeStruct((N_pad, E_pad), x.dtype),
        grid_spec=pltpu.PrefetchScalarGridSpec(
            num_scalar_prefetch=0,
            grid=(n_row, n_h),
            in_specs=in_specs,
            out_specs=out_spec,
            scratch_shapes=[pltpu.VMEM((TM, E_pad), jnp.float32)],
        ),
        compiler_params=pltpu.CompilerParams(
            dimension_semantics=("parallel", "arbitrary"),
            vmem_limit_bytes=vmem_limit_bytes,
        ),
    )(x2d, prepared["w_up"], prepared["b_up"], prepared["w2"], prepared["b2"])
    return out[:N, :E].reshape(B, S, E)


def init_params(key, embed_dim, hidden_dim, gated, dtype=jnp.float32):
    # Matches FeedForward.reset_parameters: normal(0, std), zero biases.
    std = (2.0 / (hidden_dim + embed_dim)) ** 0.5
    k1, k2, k3 = jax.random.split(key, 3)
    params = {
        "w1": (std * jax.random.normal(k1, (embed_dim, hidden_dim))).astype(dtype),
        "b1": jnp.zeros((1, hidden_dim), dtype),
        "w2": (std * jax.random.normal(k2, (hidden_dim, embed_dim))).astype(dtype),
        "b2": jnp.zeros((1, embed_dim), dtype),
    }
    if gated:
        params["wg"] = (std * jax.random.normal(k3, (embed_dim, hidden_dim))).astype(dtype)
        params["bg"] = jnp.zeros((1, hidden_dim), dtype)
    return params


def feedforward_ref(x, params, *, activation: str, gated: bool):
    """Pure-JAX reference mirroring the PyTorch forward."""
    if gated:
        gate = _apply_activation(activation, x @ params["wg"] + params["bg"][0])
        out = x @ params["w1"] + params["b1"][0]
        return (gate * out) @ params["w2"] + params["b2"][0]
    out = _apply_activation(activation, x @ params["w1"] + params["b1"][0])
    return out @ params["w2"] + params["b2"][0]


if __name__ == "__main__":
    key = jax.random.PRNGKey(0)
    batch, seq, embed_dim, hidden_dim = 2, 8, 32, 64
    activation = "silu"

    kx, kp_g, kp_ng = jax.random.split(key, 3)
    x = jax.random.normal(kx, (batch, seq, embed_dim), jnp.float32)

    # Gated variant (f32 params).
    params_g = init_params(kp_g, embed_dim, hidden_dim, gated=True)
    prep_g = prepare_ffn_params(params_g, gated=True)          # hoisted weight prep
    out_g = feedforward_pallas(x, prep_g, activation=activation)
    jax.block_until_ready(out_g)
    ref_g = feedforward_ref(x, params_g, activation=activation, gated=True)
    assert jnp.allclose(out_g, ref_g, atol=2e-5, rtol=2e-5), "gated mismatch"

    # Non-gated variant (f32 params).
    params_ng = init_params(kp_ng, embed_dim, hidden_dim, gated=False)
    prep_ng = prepare_ffn_params(params_ng, gated=False)
    out_ng = feedforward_pallas(x, prep_ng, activation=activation)
    jax.block_until_ready(out_ng)
    ref_ng = feedforward_ref(x, params_ng, activation=activation, gated=False)
    assert jnp.allclose(out_ng, ref_ng, atol=2e-5, rtol=2e-5), "non-gated mismatch"

    # bf16-weight fast path (halved weight HBM traffic, fast MXU path).
    prep_g_bf16 = prepare_ffn_params(params_g, gated=True, param_dtype=jnp.bfloat16)
    out_g_bf16 = feedforward_pallas(x, prep_g_bf16, activation=activation)
    jax.block_until_ready(out_g_bf16)
    assert jnp.allclose(out_g_bf16.astype(jnp.float32), ref_g,
                        atol=1e-1, rtol=1e-1), "bf16 gated mismatch"

    print("KERNEL_OK")
</pallas_src>

<mosaic_0001>
module attributes {stable_mosaic.version = 11 : i64} {
  func.func @_ffn_kernel_gated(%arg0: i32, %arg1: i32, %arg2: memref<16x128xf32, #tpu.memory_space<vmem>>, %arg3: memref<128x256xf32, #tpu.memory_space<vmem>>, %arg4: memref<1x256xf32, #tpu.memory_space<vmem>>, %arg5: memref<128x128xf32, #tpu.memory_space<vmem>>, %arg6: memref<1x128xf32, #tpu.memory_space<vmem>>, %arg7: memref<16x128xf32, #tpu.memory_space<vmem>>, %arg8: memref<16x128xf32, #tpu.memory_space<vmem>>) attributes {dimension_semantics = [#tpu.dimension_semantics<parallel>, #tpu.dimension_semantics<arbitrary>], iteration_bounds = array<i64: 1, 1>, scalar_prefetch = 0 : i64, scratch_operands = 1 : i64, tpu.core_type = #tpu.core_type<tc>, window_params = [{transform_indices = @transform_0, window_bounds = array<i64: 16, 128>}, {transform_indices = @transform_1, window_bounds = array<i64: 128, 256>}, {transform_indices = @transform_2, window_bounds = array<i64: 1, 256>}, {transform_indices = @transform_3, window_bounds = array<i64: 128, 128>}, {pipeline_mode = #tpu.pipeline_mode<synchronous>, transform_indices = @transform_4, window_bounds = array<i64: 1, 128>}, {transform_indices = @transform_5, window_bounds = array<i64: 16, 128>}]} {
    %c0_i32 = arith.constant 0 : i32
    %0 = arith.cmpi eq, %arg1, %c0_i32 : i32
    %1 = arith.extui %0 : i1 to i32
    %c0_i32_0 = arith.constant 0 : i32
    %2 = arith.cmpi ne, %1, %c0_i32_0 : i32
    scf.if %2 {
      %cst_16 = arith.constant 0.000000e+00 : f32
      %26 = vector.broadcast %cst_16 : f32 to vector<16x128xf32>
      %c0_17 = arith.constant 0 : index
      %c0_18 = arith.constant 0 : index
      %27 = vector.load %arg8[%c0_17, %c0_18] : memref<16x128xf32, #tpu.memory_space<vmem>>, vector<16x128xf32>
      tpu.vector_store %arg8[%c0_17, %c0_18], %26 {strides = array<i32>} : memref<16x128xf32, #tpu.memory_space<vmem>>, vector<16x128xf32>,
    } else {
    }
    %c0 = arith.constant 0 : index
    %c0_1 = arith.constant 0 : index
    %3 = vector.load %arg2[%c0, %c0_1] : memref<16x128xf32, #tpu.memory_space<vmem>>, vector<16x128xf32>
    %c0_2 = arith.constant 0 : index
    %c0_3 = arith.constant 0 : index
    %4 = vector.load %arg3[%c0_2, %c0_3] : memref<128x256xf32, #tpu.memory_space<vmem>>, vector<128x256xf32>
    %cst = arith.constant dense<0.000000e+00> : vector<16x256xf32>
    %5 = tpu.matmul %3, %4, %cst {dimension_numbers = #tpu.dot_dimension_numbers<[1], [0], [0], [1], [0, 0, 1, 1], [], []>} : vector<16x128xf32>, vector<128x256xf32>, vector<16x256xf32> -> vector<16x256xf32>
    %c0_4 = arith.constant 0 : index
    %c0_5 = arith.constant 0 : index
    %6 = vector.load %arg4[%c0_4, %c0_5] : memref<1x256xf32, #tpu.memory_space<vmem>>, vector<1x256xf32>
    %7 = vector.broadcast %6 : vector<1x256xf32> to vector<16x256xf32>
    %8 = arith.addf %5, %7 : vector<16x256xf32>
    %9 = vector.extract_strided_slice %8 {offsets = [0, 0], sizes = [16, 128], strides = [1, 1]} : vector<16x256xf32> to vector<16x128xf32>
    %10 = arith.negf %9 : vector<16x128xf32>
    %11 = math.exp %10 : vector<16x128xf32>
    %cst_6 = arith.constant 1.000000e+00 : f32
    %12 = vector.broadcast %cst_6 : f32 to vector<16x128xf32>
    %13 = arith.addf %12, %11 : vector<16x128xf32>
    %14 = arith.divf %12, %13 : vector<16x128xf32>
    %15 = arith.mulf %9, %14 : vector<16x128xf32>
    %16 = vector.extract_strided_slice %8 {offsets = [0, 128], sizes = [16, 128], strides = [1, 1]} : vector<16x256xf32> to vector<16x128xf32>
    %c0_7 = arith.constant 0 : index
    %c0_8 = arith.constant 0 : index
    %17 = vector.load %arg8[%c0_7, %c0_8] : memref<16x128xf32, #tpu.memory_space<vmem>>, vector<16x128xf32>
    %18 = arith.mulf %15, %16 : vector<16x128xf32>
    %c0_9 = arith.constant 0 : index
    %c0_10 = arith.constant 0 : index
    %19 = vector.load %arg5[%c0_9, %c0_10] : memref<128x128xf32, #tpu.memory_space<vmem>>, vector<128x128xf32>
    %cst_11 = arith.constant dense<0.000000e+00> : vector<16x128xf32>
    %20 = tpu.matmul %18, %19, %cst_11 {dimension_numbers = #tpu.dot_dimension_numbers<[1], [0], [0], [1], [0, 0, 1, 1], [], []>} : vector<16x128xf32>, vector<128x128xf32>, vector<16x128xf32> -> vector<16x128xf32>
    %21 = arith.addf %17, %20 : vector<16x128xf32>
    %c0_12 = arith.constant 0 : index
    %c0_13 = arith.constant 0 : index
    %22 = vector.load %arg8[%c0_12, %c0_13] : memref<16x128xf32, #tpu.memory_space<vmem>>, vector<16x128xf32>
    tpu.vector_store %arg8[%c0_12, %c0_13], %21 {strides = array<i32>} : memref<16x128xf32, #tpu.memory_space<vmem>>, vector<16x128xf32>,
    %c0_i32_14 = arith.constant 0 : i32
    %23 = arith.cmpi eq, %arg1, %c0_i32_14 : i32
    %24 = arith.extui %23 : i1 to i32
    %c0_i32_15 = arith.constant 0 : i32
    %25 = arith.cmpi ne, %24, %c0_i32_15 : i32
    scf.if %25 {
      %c0_16 = arith.constant 0 : index
      %c0_17 = arith.constant 0 : index
      %26 = vector.load %arg8[%c0_16, %c0_17] : memref<16x128xf32, #tpu.memory_space<vmem>>, vector<16x128xf32>
      %c0_18 = arith.constant 0 : index
      %c0_19 = arith.constant 0 : index
      %27 = vector.load %arg6[%c0_18, %c0_19] : memref<1x128xf32, #tpu.memory_space<vmem>>, vector<1x128xf32>
      %28 = vector.broadcast %27 : vector<1x128xf32> to vector<16x128xf32>
      %29 = arith.addf %26, %28 : vector<16x128xf32>
      %c0_20 = arith.constant 0 : index
      %c0_21 = arith.constant 0 : index
      %30 = vector.load %arg7[%c0_20, %c0_21] : memref<16x128xf32, #tpu.memory_space<vmem>>, vector<16x128xf32>
      tpu.vector_store %arg7[%c0_20, %c0_21], %29 {strides = array<i32>} : memref<16x128xf32, #tpu.memory_space<vmem>>, vector<16x128xf32>,
    } else {
    }
    return
  }
  func.func @transform_0(%arg0: i32, %arg1: i32) -> (i32, i32) {
    %c0_i32 = arith.constant 0 : i32
    %c0_i32_0 = arith.constant 0 : i32
    return %arg0, %c0_i32 : i32, i32
  }
  func.func @transform_1(%arg0: i32, %arg1: i32) -> (i32, i32) {
    %c0_i32 = arith.constant 0 : i32
    %c0_i32_0 = arith.constant 0 : i32
    return %c0_i32, %arg1 : i32, i32
  }
  func.func @transform_2(%arg0: i32, %arg1: i32) -> (i32, i32) {
    %c0_i32 = arith.constant 0 : i32
    %c0_i32_0 = arith.constant 0 : i32
    return %c0_i32, %arg1 : i32, i32
  }
  func.func @transform_3(%arg0: i32, %arg1: i32) -> (i32, i32) {
    %c0_i32 = arith.constant 0 : i32
    %c0_i32_0 = arith.constant 0 : i32
    return %arg1, %c0_i32 : i32, i32
  }
  func.func @transform_4(%arg0: i32, %arg1: i32) -> (i32, i32) {
    %c0_i32 = arith.constant 0 : i32
    %c0_i32_0 = arith.constant 0 : i32
    %c0_i32_1 = arith.constant 0 : i32
    return %c0_i32, %c0_i32_0 : i32, i32
  }
  func.func @transform_5(%arg0: i32, %arg1: i32) -> (i32, i32) {
    %c0_i32 = arith.constant 0 : i32
    %c0_i32_0 = arith.constant 0 : i32
    return %arg0, %c0_i32 : i32, i32
  }
}

</mosaic_0001>

<llo_original>
// kernel: tpu_custom_call.1
$region0: #{tpu_custom_call.1}
  #allocation0 [shape = 'u32[]', space=smem, size = 0x4, offset = 0x4, fixed_abs, tag = 'smem constant byte address 0x4 - core index']
  #allocation1 [shape = 'u32[72,128]{1,0:T(1,128)}', space=vmem, size = 0x9000, scoped, tag = 'internal scratch']
  #allocation2 [shape = 'f32[16,128]{1,0:T(8,128)}', space=vmem, size = 0x2000, scoped, tag = 'scratch operand']
  %s0 = inlined_call_operand.hbm [shape: f32[16,128], index: 0, kind: input, shape index: {}]
  %s1 = inlined_call_operand.hbm [shape: f32[128,256], index: 1, kind: input, shape index: {}]
  %s2 = inlined_call_operand.hbm [shape: f32[1,256], index: 2, kind: input, shape index: {}]
  %s3 = inlined_call_operand.hbm [shape: f32[128,128], index: 3, kind: input, shape index: {}]
  %s4 = inlined_call_operand.vmem [shape: f32[1,128], index: 4, kind: input, shape index: {}]
  %s5 = inlined_call_operand.hbm [shape: f32[16,128], index: 5, kind: output, shape index: {}]
  %s6 = sld [smem:[#allocation0]]
  $region54: #{tpu_custom_call.1} parent=0
    _
  %s8 = ssub.s32 1, %s6
  %s9 = scalar_select 0, %s8, %s6
  $region1: #{tpu_custom_call.1} parent=0
    #allocation3 [shape = 'u8[8192]{0}', space=vmem, size = 0x2000, scoped, tag = 'input window, operand 0, single buffered']
    #allocation4 [shape = 's32[1]{0}', space=sflag, size = 0x4, scoped, tag = 'scoped memory for tpu_custom_call.1']
    #allocation5 [shape = 's32[1]{0}', space=sflag, size = 0x4, scoped, tag = 'scoped memory for tpu_custom_call.1']
    #allocation6 [shape = 'u8[131072]{0}', space=vmem, size = 0x20000, scoped, tag = 'input window, operand 1, single buffered']
    #allocation7 [shape = 's32[1]{0}', space=sflag, size = 0x4, scoped, tag = 'scoped memory for tpu_custom_call.1']
    #allocation8 [shape = 'u8[1024]{0}', space=vmem, size = 0x400, scoped, tag = 'input window, operand 2, single buffered']
    #allocation9 [shape = 'u8[65536]{0}', space=vmem, size = 0x10000, scoped, tag = 'input window, operand 3, single buffered']
    #allocation10 [shape = 's32[1]{0}', space=sflag, size = 0x4, scoped, tag = 'scoped memory for tpu_custom_call.1']
    #allocation11 [shape = 'u8[8192]{0}', space=vmem, size = 0x2000, scoped, tag = 'output window, operand 0, single buffered']
    %10 = vsyncpa [#allocation4], 0
    %11 = vsyncpa [#allocation7], 0
    %12 = vsyncpa [#allocation10], 0
    %13 = vsyncpa [#allocation5], 0
    // Predicated region
    $region2: #{tpu_custom_call.1} parent=1 // pred_check
      _
    $region3: #{tpu_custom_call.1} parent=1 // pred_check_branch
      %15 = sbr.rel (0) target = $region5
    $region4: #{tpu_custom_call.1} parent=1 // pred_region
      %17 = vsyncadd [#allocation4], 0
      %s18 = sshll.u32 %s0, 4
      %s19 = int_to_ptr.hbm [resolvable:$true] %s18
      %s20 = sshll.u32 [#allocation3], 4
      %s21 = int_to_ptr.vmem [resolvable:$true] %s20
      %26 = dma.hbm_to_vmem [thread:$0]  %s19, 256, %s21, [#allocation4], 128, 128, 8
    $region5: #{tpu_custom_call.1} parent=1 // pred_fallthru
      _
    // Predicated region
    $region6: #{tpu_custom_call.1} parent=1 // pred_check
      _
    $region7: #{tpu_custom_call.1} parent=1 // pred_check_branch
      %28 = sbr.rel (0) target = $region9
    $region8: #{tpu_custom_call.1} parent=1 // pred_region
      %30 = vsyncadd [#allocation7], 0
      %s31 = sshll.u32 %s1, 4
      %s32 = int_to_ptr.hbm [resolvable:$true] %s31
      %s33 = sshll.u32 [#allocation6], 4
      %s34 = int_to_ptr.vmem [resolvable:$true] %s33
      %39 = dma.hbm_to_vmem [thread:$0]  %s32, 4096, %s34, [#allocation7], 256, 256, 16
    $region9: #{tpu_custom_call.1} parent=1 // pred_fallthru
      _
    // Predicated region
    $region10: #{tpu_custom_call.1} parent=1 // pred_check
      _
    $region11: #{tpu_custom_call.1} parent=1 // pred_check_branch
      %41 = sbr.rel (0) target = $region13
    $region12: #{tpu_custom_call.1} parent=1 // pred_region
      %43 = vsyncadd [#allocation7], 0
      %s45 = sshll.u32 %s2, 4
      %s46 = int_to_ptr.hbm [resolvable:$true] %s45
      %s47 = sshll.u32 [#allocation8], 4
      %s48 = int_to_ptr.vmem [resolvable:$true] %s47
      %50 = dma.hbm_to_vmem [thread:$0]  %s46, 32, %s48, [#allocation7]
    $region13: #{tpu_custom_call.1} parent=1 // pred_fallthru
      _
    // Predicated region
    $region14: #{tpu_custom_call.1} parent=1 // pred_check
      _
    $region15: #{tpu_custom_call.1} parent=1 // pred_check_branch
      %52 = sbr.rel (0) target = $region17
    $region16: #{tpu_custom_call.1} parent=1 // pred_region
      %54 = vsyncadd [#allocation10], 0
      %s55 = sshll.u32 %s3, 4
      %s56 = int_to_ptr.hbm [resolvable:$true] %s55
      %s57 = sshll.u32 [#allocation9], 4
      %s58 = int_to_ptr.vmem [resolvable:$true] %s57
      %63 = dma.hbm_to_vmem [thread:$0]  %s56, 2048, %s58, [#allocation10], 128, 128, 8
    $region17: #{tpu_custom_call.1} parent=1 // pred_fallthru
      _
    // Predicated region
    $region18: #{tpu_custom_call.1} parent=1 // pred_check
      _
    $region19: #{tpu_custom_call.1} parent=1 // pred_check_branch
      %65 = sbr.rel (0) target = $region21
    $region20: #{tpu_custom_call.1} parent=1 // pred_region
      _
    $region21: #{tpu_custom_call.1} parent=1 // pred_fallthru
      _
    // Predicated region
    $region22: #{tpu_custom_call.1} parent=1 // pred_check
      _
    $region23: #{tpu_custom_call.1} parent=1 // pred_check_branch
      %67 = sbr.rel (0) target = $region25
    $region24: #{tpu_custom_call.1} parent=1 // pred_region
      %69 = dma.done [#allocation4], 256
    $region25: #{tpu_custom_call.1} parent=1 // pred_fallthru
      _
    // Predicated region
    $region26: #{tpu_custom_call.1} parent=1 // pred_check
      _
    $region27: #{tpu_custom_call.1} parent=1 // pred_check_branch
      %71 = sbr.rel (0) target = $region29
    $region28: #{tpu_custom_call.1} parent=1 // pred_region
      %73 = dma.done [#allocation7], 4096
    $region29: #{tpu_custom_call.1} parent=1 // pred_fallthru
      _
    // Predicated region
    $region30: #{tpu_custom_call.1} parent=1 // pred_check
      _
    $region31: #{tpu_custom_call.1} parent=1 // pred_check_branch
      %75 = sbr.rel (0) target = $region33
    $region32: #{tpu_custom_call.1} parent=1 // pred_region
      %77 = dma.done [#allocation7], 32
    $region33: #{tpu_custom_call.1} parent=1 // pred_fallthru
      _
    // Predicated region
    $region34: #{tpu_custom_call.1} parent=1 // pred_check
      _
    $region35: #{tpu_custom_call.1} parent=1 // pred_check_branch
      %79 = sbr.rel (0) target = $region37
    $region36: #{tpu_custom_call.1} parent=1 // pred_region
      %81 = dma.done [#allocation10], 2048
    $region37: #{tpu_custom_call.1} parent=1 // pred_fallthru
      _
    %p82 = scmp.eq.s32.totalorder 0, 0
    // Predicated region
    $region38: #{tpu_custom_call.1} parent=1 // pred_check
      %p83 = pneg %p82
    $region39: #{tpu_custom_call.1} parent=1 // pred_check_branch
      %85 = sbr.rel (%p83) target = $region41
    $region40: #{tpu_custom_call.1} parent=1 // pred_region
      %86 = vst [vmem:[#allocation2] sm:$0xff] 0.0
      %87 = vst [vmem:[#allocation2 + $0x8] sm:$0xff] 0.0
    $region41: #{tpu_custom_call.1} parent=1 // pred_fallthru
      _
    %v88 = vld [vmem:[#allocation3] sm:$0xff]
    %v89 = vld [vmem:[#allocation3 + $0x8] sm:$0xff]
    %v90 = vld [vmem:[#allocation6] sm:$0xff]
    %v91 = vld [vmem:[#allocation6 + $0x8] sm:$0xff]
    %v92 = vld [vmem:[#allocation6 + $0x10] sm:$0xff]
    %v93 = vld [vmem:[#allocation6 + $0x18] sm:$0xff]
    %v94 = vld [vmem:[#allocation6 + $0x20] sm:$0xff]
    %v95 = vld [vmem:[#allocation6 + $0x28] sm:$0xff]
    %v96 = vld [vmem:[#allocation6 + $0x30] sm:$0xff]
    %v97 = vld [vmem:[#allocation6 + $0x38] sm:$0xff]
    %v98 = vld [vmem:[#allocation6 + $0x40] sm:$0xff]
    %v99 = vld [vmem:[#allocation6 + $0x48] sm:$0xff]
    %v100 = vld [vmem:[#allocation6 + $0x50] sm:$0xff]
    %v101 = vld [vmem:[#allocation6 + $0x58] sm:$0xff]
    %v102 = vld [vmem:[#allocation6 + $0x60] sm:$0xff]
    %v103 = vld [vmem:[#allocation6 + $0x68] sm:$0xff]
    %v104 = vld [vmem:[#allocation6 + $0x70] sm:$0xff]
    %v105 = vld [vmem:[#allocation6 + $0x78] sm:$0xff]
    %v106 = vld [vmem:[#allocation6 + $0x80] sm:$0xff]
    %v107 = vld [vmem:[#allocation6 + $0x88] sm:$0xff]
    %v108 = vld [vmem:[#allocation6 + $0x90] sm:$0xff]
    %v109 = vld [vmem:[#allocation6 + $0x98] sm:$0xff]
    %v110 = vld [vmem:[#allocation6 + $0xa0] sm:$0xff]
    %v111 = vld [vmem:[#allocation6 + $0xa8] sm:$0xff]
    %v112 = vld [vmem:[#allocation6 + $0xb0] sm:$0xff]
    %v113 = vld [vmem:[#allocation6 + $0xb8] sm:$0xff]
    %v114 = vld [vmem:[#allocation6 + $0xc0] sm:$0xff]
    %v115 = vld [vmem:[#allocation6 + $0xc8] sm:$0xff]
    %v116 = vld [vmem:[#allocation6 + $0xd0] sm:$0xff]
    %v117 = vld [vmem:[#allocation6 + $0xd8] sm:$0xff]
    %v118 = vld [vmem:[#allocation6 + $0xe0] sm:$0xff]
    %v119 = vld [vmem:[#allocation6 + $0xe8] sm:$0xff]
    %v120 = vld [vmem:[#allocation6 + $0xf0] sm:$0xff]
    %v121 = vld [vmem:[#allocation6 + $0xf8] sm:$0xff]
    %v122 = vld [vmem:[#allocation8] sm:$0x3]
    %v124 = vperm.slane %v122, 0
    %v125 = vperm.slane %v122, 1
    %128 = vmatpush.msra.mxu0 %v120
    %129 = vmatpush.msra.mxu0 %v118
    %130 = vmatpush.msra.mxu0 %v116
    %131 = vmatpush.msra.mxu0 %v114
    %132 = vmatpush.msra.mxu0 %v112
    %133 = vmatpush.msra.mxu0 %v110
    %134 = vmatpush.msra.mxu0 %v108
    %135 = vmatpush.msra.mxu0 %v106
    %136 = vmatpush.msra.mxu0 %v104
    %137 = vmatpush.msra.mxu0 %v102
    %138 = vmatpush.msra.mxu0 %v100
    %139 = vmatpush.msra.mxu0 %v98
    %140 = vmatpush.msra.mxu0 %v96
    %141 = vmatpush.msra.mxu0 %v94
    %142 = vmatpush.msra.mxu0 %v92
    %143 = vmatpush.msra.mxu0 %v90
    %144 = vmatmul.f32.gmra.mxu0 %v88
    %v145 = vpop.f32.mrf.mxu0
    %v146 = vadd.f32 %v124, %v145
    %147 = vmatmul.f32.gmra.mxu0 %v89
    %v148 = vpop.f32.mrf.mxu0
    %v149 = vadd.f32 %v124, %v148
    %150 = vdwg.mxu0
    %151 = vmatpush.msra.mxu0 %v121
    %152 = vmatpush.msra.mxu0 %v119
    %153 = vmatpush.msra.mxu0 %v117
    %154 = vmatpush.msra.mxu0 %v115
    %155 = vmatpush.msra.mxu0 %v113
    %156 = vmatpush.msra.mxu0 %v111
    %157 = vmatpush.msra.mxu0 %v109
    %158 = vmatpush.msra.mxu0 %v107
    %159 = vmatpush.msra.mxu0 %v105
    %160 = vmatpush.msra.mxu0 %v103
    %161 = vmatpush.msra.mxu0 %v101
    %162 = vmatpush.msra.mxu0 %v99
    %163 = vmatpush.msra.mxu0 %v97
    %164 = vmatpush.msra.mxu0 %v95
    %165 = vmatpush.msra.mxu0 %v93
    %166 = vmatpush.msra.mxu0 %v91
    %167 = vmatmul.f32.gmra.mxu0 %v88
    %v168 = vpop.f32.mrf.mxu0
    %v169 = vadd.f32 %v125, %v168
    %170 = vmatmul.f32.gmra.mxu0 %v89
    %v171 = vpop.f32.mrf.mxu0
    %v172 = vadd.f32 %v125, %v171
    %173 = vdwg.mxu0
    %v174 = vxor.u32 %v146, 2147483648
    %v175 = vxor.u32 %v149, 2147483648
    %v176 = vmul.f32 %v174, 1.442695
    %v177 = vpow.pop %v176
    %v178 = vmul.f32 %v175, 1.442695
    %v179 = vpow.pop %v178
    %v180 = vadd.f32 %v177, 1.0
    %v181 = vadd.f32 %v179, 1.0
    %v182 = vrcp.pop %v180
    %v183 = vmul.f32 %v180, %v182
    %v184 = vsub.f32 1.0, %v183
    %v185 = vmul.f32 %v182, %v184
    %v186 = vadd.f32 %v182, %v185
    %vm187 = vweird.f32 %v180
    %vm188 = vweird.f32 %v182
    %vm189 = vmor %vm187, %vm188
    %v190 = vsel %vm189, %v182, %v186
    %v191 = vand.u32 2147483647, %v180
    %vm192 = vcmp.eq.f32.partialorder %v191, 8.507059e+37
    %v193 = vand.u32 %v180, 2147483648
    %v194 = vor.u32 1.1754944e-38, %v193
    %v195 = vsel %vm192, %v194, %v190
    %v196 = vmul.f32 1.0, %v195
    %v197 = vrcp.pop %v181
    %v198 = vmul.f32 %v181, %v197
    %v199 = vsub.f32 1.0, %v198
    %v200 = vmul.f32 %v197, %v199
    %v201 = vadd.f32 %v197, %v200
    %vm202 = vweird.f32 %v181
    %vm203 = vweird.f32 %v197
    %vm204 = vmor %vm202, %vm203
    %v205 = vsel %vm204, %v197, %v201
    %v206 = vand.u32 2147483647, %v181
    %vm207 = vcmp.eq.f32.partialorder %v206, 8.507059e+37
    %v208 = vand.u32 %v181, 2147483648
    %v209 = vor.u32 1.1754944e-38, %v208
    %v210 = vsel %vm207, %v209, %v205
    %v211 = vmul.f32 1.0, %v210
    %v212 = vmul.f32 %v146, %v196
    %v213 = vmul.f32 %v149, %v211
    %v214 = vld [vmem:[#allocation2] sm:$0xff]
    %v215 = vld [vmem:[#allocation2 + $0x8] sm:$0xff]
    %v216 = vmul.f32 %v212, %v169
    %v217 = vmul.f32 %v213, %v172
    %v218 = vld [vmem:[#allocation9] sm:$0xff]
    %v219 = vld [vmem:[#allocation9 + $0x8] sm:$0xff]
    %v220 = vld [vmem:[#allocation9 + $0x10] sm:$0xff]
    %v221 = vld [vmem:[#allocation9 + $0x18] sm:$0xff]
    %v222 = vld [vmem:[#allocation9 + $0x20] sm:$0xff]
    %v223 = vld [vmem:[#allocation9 + $0x28] sm:$0xff]
    %v224 = vld [vmem:[#allocation9 + $0x30] sm:$0xff]
    %v225 = vld [vmem:[#allocation9 + $0x38] sm:$0xff]
    %v226 = vld [vmem:[#allocation9 + $0x40] sm:$0xff]
    %v227 = vld [vmem:[#allocation9 + $0x48] sm:$0xff]
    %v228 = vld [vmem:[#allocation9 + $0x50] sm:$0xff]
    %v229 = vld [vmem:[#allocation9 + $0x58] sm:$0xff]
    %v230 = vld [vmem:[#allocation9 + $0x60] sm:$0xff]
    %v231 = vld [vmem:[#allocation9 + $0x68] sm:$0xff]
    %v232 = vld [vmem:[#allocation9 + $0x70] sm:$0xff]
    %v233 = vld [vmem:[#allocation9 + $0x78] sm:$0xff]
    %234 = vmatpush.msra.mxu0 %v233
    %235 = vmatpush.msra.mxu0 %v232
    %236 = vmatpush.msra.mxu0 %v231
    %237 = vmatpush.msra.mxu0 %v230
    %238 = vmatpush.msra.mxu0 %v229
    %239 = vmatpush.msra.mxu0 %v228
    %240 = vmatpush.msra.mxu0 %v227
    %241 = vmatpush.msra.mxu0 %v226
    %242 = vmatpush.msra.mxu0 %v225
    %243 = vmatpush.msra.mxu0 %v224
    %244 = vmatpush.msra.mxu0 %v223
    %245 = vmatpush.msra.mxu0 %v222
    %246 = vmatpush.msra.mxu0 %v221
    %247 = vmatpush.msra.mxu0 %v220
    %248 = vmatpush.msra.mxu0 %v219
    %249 = vmatpush.msra.mxu0 %v218
    %250 = vmatmul.f32.gmra.mxu0 %v216
    %v251 = vpop.f32.mrf.mxu0
    %v252 = vadd.f32 0.0, %v251
    %253 = vmatmul.f32.gmra.mxu0 %v217
    %v254 = vpop.f32.mrf.mxu0
    %v255 = vadd.f32 0.0, %v254
    %256 = vdwg.mxu0
    %v257 = vadd.f32 %v214, %v252
    %v258 = vadd.f32 %v215, %v255
    %259 = vst [vmem:[#allocation2] sm:$0xff] %v257
    %260 = vst [vmem:[#allocation2 + $0x8] sm:$0xff] %v258
    // Predicated region
    $region42: #{tpu_custom_call.1} parent=1 // pred_check
      %p261 = pneg %p82
    $region43: #{tpu_custom_call.1} parent=1 // pred_check_branch
      %263 = sbr.rel (%p261) target = $region45
    $region44: #{tpu_custom_call.1} parent=1 // pred_region
      %v264 = vld [vmem:[#allocation2] sm:$0xff]
      %v265 = vld [vmem:[#allocation2 + $0x8] sm:$0xff]
      %v266 = vld [vmem:[%s4] sm:$0x1]
      %v268 = vperm.slane %v266, 0
      %v270 = vadd.f32 %v264, %v268
      %v271 = vadd.f32 %v265, %v268
      %272 = vst [vmem:[#allocation11] sm:$0xff] %v270
      %273 = vst [vmem:[#allocation11 + $0x8] sm:$0xff] %v271
    $region45: #{tpu_custom_call.1} parent=1 // pred_fallthru
      _
    // Predicated region
    $region46: #{tpu_custom_call.1} parent=1 // pred_check
      _
    $region47: #{tpu_custom_call.1} parent=1 // pred_check_branch
      %275 = sbr.rel (0) target = $region49
    $region48: #{tpu_custom_call.1} parent=1 // pred_region
      %277 = vsyncadd [#allocation5], 0
      %s278 = sshll.u32 [#allocation11], 4
      %s279 = int_to_ptr.vmem [resolvable:$true] %s278
      %s280 = sshll.u32 %s5, 4
      %s281 = int_to_ptr.hbm [resolvable:$true] %s280
      %286 = dma.vmem_to_hbm [thread:$0]  %s279, 256, %s281, [#allocation5], 128, 128, 8
    $region49: #{tpu_custom_call.1} parent=1 // pred_fallthru
      _
    // Predicated region
    $region50: #{tpu_custom_call.1} parent=1 // pred_check
      _
    $region51: #{tpu_custom_call.1} parent=1 // pred_check_branch
      %288 = sbr.rel (0) target = $region53
    $region52: #{tpu_custom_call.1} parent=1 // pred_region
      %290 = dma.done [#allocation5], 256
    $region53: #{tpu_custom_call.1} parent=1 // pred_fallthru
      _
    %291 = vsyncpa [#allocation4], 1
    %292 = vsyncpa [#allocation7], 1
    %293 = vsyncpa [#allocation10], 1
    %294 = vsyncpa [#allocation5], 1

</llo_original>
